<compile_context>
chip_gen: v7x
topology: tpu7x:2x2x1
jax: 0.10.0
libtpu: 0.0.40
codegen_flags: <defaults>
</compile_context>

<pallas_src>
import jax
import jax.numpy as jnp
from jax.experimental import pallas as pl
from jax.experimental.pallas import tpu as pltpu

BETA_MIN = 0.1
BETA_MAX = 20.0
BETA_D = BETA_MAX - BETA_MIN
EPS_T = 1e-5

_MAX_LANE_TILE = 2048          # lanes per block (multiple of 128)
_MAX_UNROLLED_MIX_ROWS = 16    # VPU FMA mix below this, MXU dot above


def _poisson_vp_kernel(x_ref, n_ref, wg_ref, sig_ref, wl_ref, bias_ref,
                       out_ref):
    """One (GC rows, TILE lanes) block of the PoissonVP loss."""
    x = x_ref[...]                       # (GC, T) f32
    n = n_ref[...]                       # (GC, T) f32, standard normal

    # Noisy input: inputs + randn * sigma  (sigma broadcast per row).
    y = x + n * sig_ref[...]

    # wrap_net channel mix.  wg already holds c_in * W as a per-batch
    # block-diagonal (GC, GC) matrix, so no full-tile c_in multiply is needed.
    w = wg_ref[...]
    gc = x.shape[0]
    if gc <= _MAX_UNROLLED_MIX_ROWS:
        # Unrolled VPU FMA chain: d[r, :] = sum_k w[r, k] * y[k, :]
        acc = w[:, 0:1] * y[0:1, :]
        for k in range(1, gc):
            acc = acc + w[:, k:k + 1] * y[k:k + 1, :]
    else:
        acc = jnp.dot(w, y, preferred_element_type=jnp.float32)
    d_yn = acc + bias_ref[...]

    # loss = weight * (D_yn - inputs)^2, weight broadcast per row.
    diff = d_yn - x
    out_ref[...] = wl_ref[...] * diff * diff


def _pick_group(batch, channels):
    """Batches packed per block so rows are a multiple of 8 (full sublane
    occupancy) or the full row extent (always a legal block shape)."""
    for g in range(1, batch + 1):
        if batch % g == 0 and (channels * g) % 8 == 0:
            return g
    return batch


def _pick_lane_tile(hw, max_tile=_MAX_LANE_TILE):
    if hw <= max_tile:
        return hw
    for t in range(max_tile - max_tile % 128, 127, -128):
        if hw % t == 0:
            return t
    return hw  # irregular spatial size: single full-extent block


def poisson_vp_loss(x_nchw, key, wmat, bias):
    """PoissonVP forward. Returns (loss, sigma, weight, noise)."""
    B, C, H, W = x_nchw.shape
    HW = H * W
    R = B * C

    k_u, k_n = jax.random.split(key)

    # rnd_uniform ~ U[0,1) per batch; sigma(t) = sqrt(exp(.5*bd*t^2+bm*t) - 1)
    u = jax.random.uniform(k_u, (B,), dtype=jnp.float32)
    t = 1.0 + u * (EPS_T - 1.0)
    sigma = jnp.sqrt(jnp.exp(0.5 * BETA_D * t * t + BETA_MIN * t) - 1.0)
    w_loss = 1.0 / (sigma * sigma)
    c_in = jax.lax.rsqrt(sigma * sigma + 1.0)

    G = _pick_group(B, C)           # batches packed per row block
    GC = G * C                      # rows per block (sublane axis)
    NG = B // G                     # number of row blocks
    T = _pick_lane_tile(HW)         # lanes per block

    x2 = x_nchw.reshape(R, HW).astype(jnp.float32)

    # Standard-normal noise (randn_like); sigma scaling happens in the kernel.
    noise2 = jax.random.normal(k_n, (R, HW), dtype=jnp.float32)

    # Per-batch scaled weights -> per-group block-diagonal (GC, GC) matrices,
    # stacked as a 2-D (NG*GC, GC) array (c_in folded in once, on the host).
    wmat_f32 = wmat.astype(jnp.float32)
    wb = (c_in[:, None, None] * wmat_f32[None]).reshape(NG, G, C, C)
    wg = jnp.zeros((NG, GC, GC), jnp.float32)
    for i in range(G):
        wg = wg.at[:, i * C:(i + 1) * C, i * C:(i + 1) * C].set(wb[:, i])
    wg2 = wg.reshape(NG * GC, GC)

    sig_col = jnp.repeat(sigma, C).reshape(R, 1)        # per-row sigma
    wl_col = jnp.repeat(w_loss, C).reshape(R, 1)        # per-row 1/sigma^2
    bias_col = jnp.tile(bias.astype(jnp.float32), G).reshape(GC, 1)

    grid = (NG, HW // T)

    in_specs = [
        pl.BlockSpec((GC, T), lambda g, s: (g, s)),          # x rows
        pl.BlockSpec((GC, T), lambda g, s: (g, s)),          # noise rows
        pl.BlockSpec((GC, GC), lambda g, s: (g, 0)),         # c_in * W (blkdiag)
        pl.BlockSpec((GC, 1), lambda g, s: (g, 0)),          # sigma per row
        pl.BlockSpec((GC, 1), lambda g, s: (g, 0)),          # weight per row
        pl.BlockSpec((GC, 1), lambda g, s: (0, 0)),          # bias
    ]

    loss2 = pl.pallas_call(
        _poisson_vp_kernel,
        out_shape=jax.ShapeDtypeStruct((R, HW), jnp.float32),
        grid=grid,
        in_specs=in_specs,
        out_specs=pl.BlockSpec((GC, T), lambda g, s: (g, s)),
        compiler_params=pltpu.CompilerParams(
            dimension_semantics=("parallel", "parallel")),
    )(x2, noise2, wg2, sig_col, wl_col, bias_col)

    noise = noise2.reshape(B, C, H, W)
    return loss2.reshape(B, C, H, W), sigma, w_loss, noise


def _reference(x_nchw, sigma, w_loss, noise_nchw, wmat, bias):
    """Pure-JAX reference of the same computation (uses the same noise)."""
    B, C, H, W = x_nchw.shape
    x = x_nchw.reshape(B, C, H * W).astype(jnp.float32)
    n = noise_nchw.reshape(B, C, H * W).astype(jnp.float32)
    y = x + n * sigma[:, None, None]
    c_in = jax.lax.rsqrt(sigma * sigma + 1.0)
    w_scaled = c_in[:, None, None] * wmat.astype(jnp.float32)[None]
    d = jnp.einsum("bck,bkp->bcp", w_scaled, y) + bias.reshape(1, C, 1)
    loss = w_loss[:, None, None] * (d - x) ** 2
    return loss.reshape(B, C, H, W)


if __name__ == "__main__":
    B, C, H, W = 2, 4, 16, 16

    key = jax.random.PRNGKey(0)
    k_x, k_w, k_fwd = jax.random.split(key, 3)

    # Deterministic example input (NCHW, matches PyTorch conv convention).
    x = jax.random.normal(k_x, (B, C, H, W), dtype=jnp.float32)

    # Deterministic synthetic wrap_net parameters (1x1 conv: C->C).
    wmat = (jnp.eye(C, dtype=jnp.float32)
            + 0.1 * jax.random.normal(k_w, (C, C), dtype=jnp.float32))
    bias = 0.01 * jnp.arange(C, dtype=jnp.float32)

    loss, sigma, w_loss, noise = poisson_vp_loss(x, k_fwd, wmat, bias)
    loss = jax.block_until_ready(loss)

    assert loss.shape == (B, C, H, W)

    # Noise should look like randn_like (loose statistical check).
    n_flat = noise.reshape(-1)
    assert abs(float(jnp.mean(n_flat))) < 0.25, "noise mean off"
    assert 0.6 < float(jnp.std(n_flat)) < 1.4, "noise std off"

    ref = _reference(x, sigma, w_loss, noise, wmat, bias)
    assert jnp.allclose(loss, ref, rtol=1e-4, atol=1e-5), "mismatch vs reference"

    print("KERNEL_OK")
</pallas_src>

<mosaic_0001>
module attributes {stable_mosaic.version = 11 : i64} {
  func.func @_poisson_vp_kernel(%arg0: i32, %arg1: i32, %arg2: memref<8x256xf32, #tpu.memory_space<vmem>>, %arg3: memref<8x256xf32, #tpu.memory_space<vmem>>, %arg4: memref<8x8xf32, #tpu.memory_space<vmem>>, %arg5: memref<8x1xf32, #tpu.memory_space<vmem>>, %arg6: memref<8x1xf32, #tpu.memory_space<vmem>>, %arg7: memref<8x1xf32, #tpu.memory_space<vmem>>, %arg8: memref<8x256xf32, #tpu.memory_space<vmem>>) attributes {dimension_semantics = [#tpu.dimension_semantics<parallel>, #tpu.dimension_semantics<parallel>], iteration_bounds = array<i64: 1, 1>, scalar_prefetch = 0 : i64, scratch_operands = 0 : i64, tpu.core_type = #tpu.core_type<tc>, window_params = [{transform_indices = @transform_0, window_bounds = array<i64: 8, 256>}, {transform_indices = @transform_1, window_bounds = array<i64: 8, 256>}, {transform_indices = @transform_2, window_bounds = array<i64: 8, 8>}, {transform_indices = @transform_3, window_bounds = array<i64: 8, 1>}, {transform_indices = @transform_4, window_bounds = array<i64: 8, 1>}, {pipeline_mode = #tpu.pipeline_mode<synchronous>, transform_indices = @transform_5, window_bounds = array<i64: 8, 1>}, {transform_indices = @transform_6, window_bounds = array<i64: 8, 256>}]} {
    %c0 = arith.constant 0 : index
    %c0_0 = arith.constant 0 : index
    %0 = vector.load %arg2[%c0, %c0_0] : memref<8x256xf32, #tpu.memory_space<vmem>>, vector<8x256xf32>
    %c0_1 = arith.constant 0 : index
    %c0_2 = arith.constant 0 : index
    %1 = vector.load %arg3[%c0_1, %c0_2] : memref<8x256xf32, #tpu.memory_space<vmem>>, vector<8x256xf32>
    %c0_3 = arith.constant 0 : index
    %c0_4 = arith.constant 0 : index
    %2 = vector.load %arg5[%c0_3, %c0_4] : memref<8x1xf32, #tpu.memory_space<vmem>>, vector<8x1xf32>
    %3 = vector.broadcast %2 : vector<8x1xf32> to vector<8x256xf32>
    %4 = arith.mulf %1, %3 : vector<8x256xf32>
    %5 = arith.addf %0, %4 : vector<8x256xf32>
    %c0_5 = arith.constant 0 : index
    %c0_6 = arith.constant 0 : index
    %6 = vector.load %arg4[%c0_5, %c0_6] : memref<8x8xf32, #tpu.memory_space<vmem>>, vector<8x8xf32>
    %7 = vector.extract_strided_slice %6 {offsets = [0, 0], sizes = [8, 1], strides = [1, 1]} : vector<8x8xf32> to vector<8x1xf32>
    %8 = vector.extract_strided_slice %5 {offsets = [0, 0], sizes = [1, 256], strides = [1, 1]} : vector<8x256xf32> to vector<1x256xf32>
    %9 = vector.broadcast %7 : vector<8x1xf32> to vector<8x256xf32>
    %10 = vector.broadcast %8 : vector<1x256xf32> to vector<8x256xf32>
    %11 = arith.mulf %9, %10 : vector<8x256xf32>
    %12 = vector.extract_strided_slice %6 {offsets = [0, 1], sizes = [8, 1], strides = [1, 1]} : vector<8x8xf32> to vector<8x1xf32>
    %13 = vector.extract_strided_slice %5 {offsets = [1, 0], sizes = [1, 256], strides = [1, 1]} : vector<8x256xf32> to vector<1x256xf32>
    %14 = vector.broadcast %12 : vector<8x1xf32> to vector<8x256xf32>
    %15 = vector.broadcast %13 : vector<1x256xf32> to vector<8x256xf32>
    %16 = arith.mulf %14, %15 : vector<8x256xf32>
    %17 = arith.addf %11, %16 : vector<8x256xf32>
    %18 = vector.extract_strided_slice %6 {offsets = [0, 2], sizes = [8, 1], strides = [1, 1]} : vector<8x8xf32> to vector<8x1xf32>
    %19 = vector.extract_strided_slice %5 {offsets = [2, 0], sizes = [1, 256], strides = [1, 1]} : vector<8x256xf32> to vector<1x256xf32>
    %20 = vector.broadcast %18 : vector<8x1xf32> to vector<8x256xf32>
    %21 = vector.broadcast %19 : vector<1x256xf32> to vector<8x256xf32>
    %22 = arith.mulf %20, %21 : vector<8x256xf32>
    %23 = arith.addf %17, %22 : vector<8x256xf32>
    %24 = vector.extract_strided_slice %6 {offsets = [0, 3], sizes = [8, 1], strides = [1, 1]} : vector<8x8xf32> to vector<8x1xf32>
    %25 = vector.extract_strided_slice %5 {offsets = [3, 0], sizes = [1, 256], strides = [1, 1]} : vector<8x256xf32> to vector<1x256xf32>
    %26 = vector.broadcast %24 : vector<8x1xf32> to vector<8x256xf32>
    %27 = vector.broadcast %25 : vector<1x256xf32> to vector<8x256xf32>
    %28 = arith.mulf %26, %27 : vector<8x256xf32>
    %29 = arith.addf %23, %28 : vector<8x256xf32>
    %30 = vector.extract_strided_slice %6 {offsets = [0, 4], sizes = [8, 1], strides = [1, 1]} : vector<8x8xf32> to vector<8x1xf32>
    %31 = vector.extract_strided_slice %5 {offsets = [4, 0], sizes = [1, 256], strides = [1, 1]} : vector<8x256xf32> to vector<1x256xf32>
    %32 = vector.broadcast %30 : vector<8x1xf32> to vector<8x256xf32>
    %33 = vector.broadcast %31 : vector<1x256xf32> to vector<8x256xf32>
    %34 = arith.mulf %32, %33 : vector<8x256xf32>
    %35 = arith.addf %29, %34 : vector<8x256xf32>
    %36 = vector.extract_strided_slice %6 {offsets = [0, 5], sizes = [8, 1], strides = [1, 1]} : vector<8x8xf32> to vector<8x1xf32>
    %37 = vector.extract_strided_slice %5 {offsets = [5, 0], sizes = [1, 256], strides = [1, 1]} : vector<8x256xf32> to vector<1x256xf32>
    %38 = vector.broadcast %36 : vector<8x1xf32> to vector<8x256xf32>
    %39 = vector.broadcast %37 : vector<1x256xf32> to vector<8x256xf32>
    %40 = arith.mulf %38, %39 : vector<8x256xf32>
    %41 = arith.addf %35, %40 : vector<8x256xf32>
    %42 = vector.extract_strided_slice %6 {offsets = [0, 6], sizes = [8, 1], strides = [1, 1]} : vector<8x8xf32> to vector<8x1xf32>
    %43 = vector.extract_strided_slice %5 {offsets = [6, 0], sizes = [1, 256], strides = [1, 1]} : vector<8x256xf32> to vector<1x256xf32>
    %44 = vector.broadcast %42 : vector<8x1xf32> to vector<8x256xf32>
    %45 = vector.broadcast %43 : vector<1x256xf32> to vector<8x256xf32>
    %46 = arith.mulf %44, %45 : vector<8x256xf32>
    %47 = arith.addf %41, %46 : vector<8x256xf32>
    %48 = vector.extract_strided_slice %6 {offsets = [0, 7], sizes = [8, 1], strides = [1, 1]} : vector<8x8xf32> to vector<8x1xf32>
    %49 = vector.extract_strided_slice %5 {offsets = [7, 0], sizes = [1, 256], strides = [1, 1]} : vector<8x256xf32> to vector<1x256xf32>
    %50 = vector.broadcast %48 : vector<8x1xf32> to vector<8x256xf32>
    %51 = vector.broadcast %49 : vector<1x256xf32> to vector<8x256xf32>
    %52 = arith.mulf %50, %51 : vector<8x256xf32>
    %53 = arith.addf %47, %52 : vector<8x256xf32>
    %c0_7 = arith.constant 0 : index
    %c0_8 = arith.constant 0 : index
    %54 = vector.load %arg7[%c0_7, %c0_8] : memref<8x1xf32, #tpu.memory_space<vmem>>, vector<8x1xf32>
    %55 = vector.broadcast %54 : vector<8x1xf32> to vector<8x256xf32>
    %56 = arith.addf %53, %55 : vector<8x256xf32>
    %57 = arith.subf %56, %0 : vector<8x256xf32>
    %c0_9 = arith.constant 0 : index
    %c0_10 = arith.constant 0 : index
    %58 = vector.load %arg6[%c0_9, %c0_10] : memref<8x1xf32, #tpu.memory_space<vmem>>, vector<8x1xf32>
    %59 = vector.broadcast %58 : vector<8x1xf32> to vector<8x256xf32>
    %60 = arith.mulf %59, %57 : vector<8x256xf32>
    %61 = arith.mulf %60, %57 : vector<8x256xf32>
    %c0_11 = arith.constant 0 : index
    %c0_12 = arith.constant 0 : index
    %62 = vector.load %arg8[%c0_11, %c0_12] : memref<8x256xf32, #tpu.memory_space<vmem>>, vector<8x256xf32>
    tpu.vector_store %arg8[%c0_11, %c0_12], %61 {strides = array<i32>} : memref<8x256xf32, #tpu.memory_space<vmem>>, vector<8x256xf32>,
    return
  }
  func.func @transform_0(%arg0: i32, %arg1: i32) -> (i32, i32) {
    %c0_i32 = arith.constant 0 : i32
    return %arg0, %arg1 : i32, i32
  }
  func.func @transform_1(%arg0: i32, %arg1: i32) -> (i32, i32) {
    %c0_i32 = arith.constant 0 : i32
    return %arg0, %arg1 : i32, i32
  }
  func.func @transform_2(%arg0: i32, %arg1: i32) -> (i32, i32) {
    %c0_i32 = arith.constant 0 : i32
    %c0_i32_0 = arith.constant 0 : i32
    return %arg0, %c0_i32 : i32, i32
  }
  func.func @transform_3(%arg0: i32, %arg1: i32) -> (i32, i32) {
    %c0_i32 = arith.constant 0 : i32
    %c0_i32_0 = arith.constant 0 : i32
    return %arg0, %c0_i32 : i32, i32
  }
  func.func @transform_4(%arg0: i32, %arg1: i32) -> (i32, i32) {
    %c0_i32 = arith.constant 0 : i32
    %c0_i32_0 = arith.constant 0 : i32
    return %arg0, %c0_i32 : i32, i32
  }
  func.func @transform_5(%arg0: i32, %arg1: i32) -> (i32, i32) {
    %c0_i32 = arith.constant 0 : i32
    %c0_i32_0 = arith.constant 0 : i32
    %c0_i32_1 = arith.constant 0 : i32
    return %c0_i32, %c0_i32_0 : i32, i32
  }
  func.func @transform_6(%arg0: i32, %arg1: i32) -> (i32, i32) {
    %c0_i32 = arith.constant 0 : i32
    return %arg0, %arg1 : i32, i32
  }
}

</mosaic_0001>

<llo_original>
// kernel: tpu_custom_call.1
$region0: #{tpu_custom_call.1}
  #allocation0 [shape = 'u32[]', space=smem, size = 0x4, offset = 0x4, fixed_abs, tag = 'smem constant byte address 0x4 - core index']
  #allocation1 [shape = 'u32[144,128]{1,0:T(1,128)}', space=vmem, size = 0x12000, scoped, tag = 'internal scratch']
  %s0 = inlined_call_operand.vmem [shape: f32[8,256], index: 0, kind: input, shape index: {}]
  %s1 = inlined_call_operand.hbm [shape: f32[8,256], index: 1, kind: input, shape index: {}]
  %s2 = inlined_call_operand.vmem [shape: f32[8,8], index: 2, kind: input, shape index: {}]
  %s3 = inlined_call_operand.vmem [shape: f32[8,1], index: 3, kind: input, shape index: {}]
  %s4 = inlined_call_operand.vmem [shape: f32[8,1], index: 4, kind: input, shape index: {}]
  %s5 = inlined_call_operand.vmem [shape: f32[8,1], index: 5, kind: input, shape index: {}]
  %s6 = inlined_call_operand.hbm [shape: f32[8,256], index: 6, kind: output, shape index: {}]
  %s7 = sld [smem:[#allocation0]]
  $region38: #{tpu_custom_call.1} parent=0
    _
  %s9 = ssub.s32 1, %s7
  %s10 = scalar_select 0, %s9, %s7
  $region1: #{tpu_custom_call.1} parent=0
    #allocation2 [shape = 'u8[8192]{0}', space=vmem, size = 0x2000, scoped, tag = 'input window, operand 1, single buffered']
    #allocation3 [shape = 's32[1]{0}', space=sflag, size = 0x4, scoped, tag = 'scoped memory for tpu_custom_call.1']
    #allocation4 [shape = 's32[1]{0}', space=sflag, size = 0x4, scoped, tag = 'scoped memory for tpu_custom_call.1']
    #allocation5 [shape = 'u8[8192]{0}', space=vmem, size = 0x2000, scoped, tag = 'output window, operand 0, single buffered']
    %11 = vsyncpa [#allocation3], 0
    %12 = vsyncpa [#allocation4], 0
    // Predicated region
    $region2: #{tpu_custom_call.1} parent=1 // pred_check
      _
    $region3: #{tpu_custom_call.1} parent=1 // pred_check_branch
      %14 = sbr.rel (0) target = $region5
    $region4: #{tpu_custom_call.1} parent=1 // pred_region
      _
    $region5: #{tpu_custom_call.1} parent=1 // pred_fallthru
      _
    // Predicated region
    $region6: #{tpu_custom_call.1} parent=1 // pred_check
      _
    $region7: #{tpu_custom_call.1} parent=1 // pred_check_branch
      %16 = sbr.rel (0) target = $region9
    $region8: #{tpu_custom_call.1} parent=1 // pred_region
      %s18 = ssub.s32 256, 256
      %19 = vsyncadd [#allocation3], %s18
      %s21 = sshll.u32 [#allocation2], 4
      %s22 = int_to_ptr.vmem [resolvable:$true] %s21
      %24 = dma.hbm_to_vmem [thread:$0]  %s1, 256, %s22, [#allocation3]
    $region9: #{tpu_custom_call.1} parent=1 // pred_fallthru
      _
    // Predicated region
    $region10: #{tpu_custom_call.1} parent=1 // pred_check
      _
    $region11: #{tpu_custom_call.1} parent=1 // pred_check_branch
      %26 = sbr.rel (0) target = $region13
    $region12: #{tpu_custom_call.1} parent=1 // pred_region
      _
    $region13: #{tpu_custom_call.1} parent=1 // pred_fallthru
      _
    // Predicated region
    $region14: #{tpu_custom_call.1} parent=1 // pred_check
      _
    $region15: #{tpu_custom_call.1} parent=1 // pred_check_branch
      %28 = sbr.rel (0) target = $region17
    $region16: #{tpu_custom_call.1} parent=1 // pred_region
      _
    $region17: #{tpu_custom_call.1} parent=1 // pred_fallthru
      _
    // Predicated region
    $region18: #{tpu_custom_call.1} parent=1 // pred_check
      _
    $region19: #{tpu_custom_call.1} parent=1 // pred_check_branch
      %30 = sbr.rel (0) target = $region21
    $region20: #{tpu_custom_call.1} parent=1 // pred_region
      _
    $region21: #{tpu_custom_call.1} parent=1 // pred_fallthru
      _
    // Predicated region
    $region22: #{tpu_custom_call.1} parent=1 // pred_check
      _
    $region23: #{tpu_custom_call.1} parent=1 // pred_check_branch
      %32 = sbr.rel (0) target = $region25
    $region24: #{tpu_custom_call.1} parent=1 // pred_region
      _
    $region25: #{tpu_custom_call.1} parent=1 // pred_fallthru
      _
    // Predicated region
    $region26: #{tpu_custom_call.1} parent=1 // pred_check
      _
    $region27: #{tpu_custom_call.1} parent=1 // pred_check_branch
      %34 = sbr.rel (0) target = $region29
    $region28: #{tpu_custom_call.1} parent=1 // pred_region
      %35 = dma.done [#allocation3], 256
    $region29: #{tpu_custom_call.1} parent=1 // pred_fallthru
      _
    %v36 = vld [vmem:[%s0] sm:$0xff]
    %v37 = vld [vmem:[%s0 + $0x8] sm:$0xff]
    %v38 = vld [vmem:[#allocation2] sm:$0xff]
    %v39 = vld [vmem:[#allocation2 + $0x8] sm:$0xff]
    %v40 = vld [vmem:[%s3] sm:$0xff]
    %42 = vset.pattern.permute.xlu0 0
    %43 = vperm.xlu0 %42, %v40
    %v44 = vpop.permute.xlu0 %43
    %v46 = vmul.f32 %v38, %v44
    %v47 = vmul.f32 %v39, %v44
    %v48 = vadd.f32 %v36, %v46
    %v49 = vadd.f32 %v37, %v47
    %v50 = vld [vmem:[%s2] sm:$0xff]
    %52 = vset.pattern.permute.xlu0 0
    %53 = vperm.xlu0 %52, %v50
    %v54 = vpop.permute.xlu0 %53
    %v56 = vlaneseq
    %v57 = vshrl.u32 %v56, 7
    %v58 = vsub.s32 0, %v57
    %v59 = vrot.slane %v48, %v58
    %v60 = vlaneseq
    %v61 = vshrl.u32 %v60, 7
    %v62 = vsub.s32 0, %v61
    %v63 = vrot.slane %v49, %v62
    %v64 = vmul.f32 %v54, %v59
    %v65 = vmul.f32 %v54, %v63
    %66 = vset.pattern.permute.xlu0 1
    %67 = vperm.xlu0 %66, %v50
    %v68 = vpop.permute.xlu0 %67
    %v70 = vlaneseq
    %v71 = vshrl.u32 %v70, 7
    %v72 = vsub.s32 1, %v71
    %v73 = vrot.slane %v48, %v72
    %v74 = vlaneseq
    %v75 = vshrl.u32 %v74, 7
    %v76 = vsub.s32 1, %v75
    %v77 = vrot.slane %v49, %v76
    %v78 = vmul.f32 %v68, %v73
    %v79 = vmul.f32 %v68, %v77
    %v80 = vadd.f32 %v64, %v78
    %v81 = vadd.f32 %v65, %v79
    %82 = vset.pattern.permute.xlu0 2
    %83 = vperm.xlu0 %82, %v50
    %v84 = vpop.permute.xlu0 %83
    %v86 = vlaneseq
    %v87 = vshrl.u32 %v86, 7
    %v88 = vsub.s32 2, %v87
    %v89 = vrot.slane %v48, %v88
    %v90 = vlaneseq
    %v91 = vshrl.u32 %v90, 7
    %v92 = vsub.s32 2, %v91
    %v93 = vrot.slane %v49, %v92
    %v94 = vmul.f32 %v84, %v89
    %v95 = vmul.f32 %v84, %v93
    %v96 = vadd.f32 %v80, %v94
    %v97 = vadd.f32 %v81, %v95
    %98 = vset.pattern.permute.xlu0 3
    %99 = vperm.xlu0 %98, %v50
    %v100 = vpop.permute.xlu0 %99
    %v102 = vlaneseq
    %v103 = vshrl.u32 %v102, 7
    %v104 = vsub.s32 3, %v103
    %v105 = vrot.slane %v48, %v104
    %v106 = vlaneseq
    %v107 = vshrl.u32 %v106, 7
    %v108 = vsub.s32 3, %v107
    %v109 = vrot.slane %v49, %v108
    %v110 = vmul.f32 %v100, %v105
    %v111 = vmul.f32 %v100, %v109
    %v112 = vadd.f32 %v96, %v110
    %v113 = vadd.f32 %v97, %v111
    %114 = vset.pattern.permute.xlu0 4
    %115 = vperm.xlu0 %114, %v50
    %v116 = vpop.permute.xlu0 %115
    %v118 = vlaneseq
    %v119 = vshrl.u32 %v118, 7
    %v120 = vsub.s32 4, %v119
    %v121 = vrot.slane %v48, %v120
    %v122 = vlaneseq
    %v123 = vshrl.u32 %v122, 7
    %v124 = vsub.s32 4, %v123
    %v125 = vrot.slane %v49, %v124
    %v126 = vmul.f32 %v116, %v121
    %v127 = vmul.f32 %v116, %v125
    %v128 = vadd.f32 %v112, %v126
    %v129 = vadd.f32 %v113, %v127
    %130 = vset.pattern.permute.xlu0 5
    %131 = vperm.xlu0 %130, %v50
    %v132 = vpop.permute.xlu0 %131
    %v134 = vlaneseq
    %v135 = vshrl.u32 %v134, 7
    %v136 = vsub.s32 5, %v135
    %v137 = vrot.slane %v48, %v136
    %v138 = vlaneseq
    %v139 = vshrl.u32 %v138, 7
    %v140 = vsub.s32 5, %v139
    %v141 = vrot.slane %v49, %v140
    %v142 = vmul.f32 %v132, %v137
    %v143 = vmul.f32 %v132, %v141
    %v144 = vadd.f32 %v128, %v142
    %v145 = vadd.f32 %v129, %v143
    %146 = vset.pattern.permute.xlu0 6
    %147 = vperm.xlu0 %146, %v50
    %v148 = vpop.permute.xlu0 %147
    %v150 = vlaneseq
    %v151 = vshrl.u32 %v150, 7
    %v152 = vsub.s32 6, %v151
    %v153 = vrot.slane %v48, %v152
    %v154 = vlaneseq
    %v155 = vshrl.u32 %v154, 7
    %v156 = vsub.s32 6, %v155
    %v157 = vrot.slane %v49, %v156
    %v158 = vmul.f32 %v148, %v153
    %v159 = vmul.f32 %v148, %v157
    %v160 = vadd.f32 %v144, %v158
    %v161 = vadd.f32 %v145, %v159
    %162 = vset.pattern.permute.xlu0 7
    %163 = vperm.xlu0 %162, %v50
    %v164 = vpop.permute.xlu0 %163
    %v166 = vlaneseq
    %v167 = vshrl.u32 %v166, 7
    %v168 = vsub.s32 7, %v167
    %v169 = vrot.slane %v48, %v168
    %v170 = vlaneseq
    %v171 = vshrl.u32 %v170, 7
    %v172 = vsub.s32 7, %v171
    %v173 = vrot.slane %v49, %v172
    %v174 = vmul.f32 %v164, %v169
    %v175 = vmul.f32 %v164, %v173
    %v176 = vadd.f32 %v160, %v174
    %v177 = vadd.f32 %v161, %v175
    %v178 = vld [vmem:[%s5] sm:$0xff]
    %180 = vset.pattern.permute.xlu0 0
    %181 = vperm.xlu0 %180, %v178
    %v182 = vpop.permute.xlu0 %181
    %v184 = vadd.f32 %v176, %v182
    %v185 = vadd.f32 %v177, %v182
    %v186 = vsub.f32 %v184, %v36
    %v187 = vsub.f32 %v185, %v37
    %v188 = vld [vmem:[%s4] sm:$0xff]
    %190 = vset.pattern.permute.xlu0 0
    %191 = vperm.xlu0 %190, %v188
    %v192 = vpop.permute.xlu0 %191
    %v194 = vmul.f32 %v192, %v186
    %v195 = vmul.f32 %v192, %v187
    %v196 = vmul.f32 %v194, %v186
    %v197 = vmul.f32 %v195, %v187
    %198 = vst [vmem:[#allocation5] sm:$0xff] %v196
    %199 = vst [vmem:[#allocation5 + $0x8] sm:$0xff] %v197
    // Predicated region
    $region30: #{tpu_custom_call.1} parent=1 // pred_check
      _
    $region31: #{tpu_custom_call.1} parent=1 // pred_check_branch
      %201 = sbr.rel (0) target = $region33
    $region32: #{tpu_custom_call.1} parent=1 // pred_region
      %s203 = ssub.s32 256, 256
      %204 = vsyncadd [#allocation4], %s203
      %s206 = sshll.u32 [#allocation5], 4
      %s207 = int_to_ptr.vmem [resolvable:$true] %s206
      %209 = dma.vmem_to_hbm [thread:$0]  %s207, 256, %s6, [#allocation4]
    $region33: #{tpu_custom_call.1} parent=1 // pred_fallthru
      _
    // Predicated region
    $region34: #{tpu_custom_call.1} parent=1 // pred_check
      _
    $region35: #{tpu_custom_call.1} parent=1 // pred_check_branch
      %211 = sbr.rel (0) target = $region37
    $region36: #{tpu_custom_call.1} parent=1 // pred_region
      %212 = dma.done [#allocation4], 256
    $region37: #{tpu_custom_call.1} parent=1 // pred_fallthru
      _
    %213 = vsyncpa [#allocation3], 1
    %214 = vsyncpa [#allocation4], 1

</llo_original>
